<compile_context>
chip_gen: v7x
topology: tpu7x:2x2x1
jax: 0.10.0
libtpu: 0.0.40
codegen_flags: <defaults>
</compile_context>

<pallas_src>
import functools

import jax
import jax.numpy as jnp
import numpy as np
from jax import lax
from jax.experimental import pallas as pl
from jax.experimental.pallas import tpu as pltpu


def _vmem_budget_bytes() -> int:
    """Scoped-VMEM budget with headroom, valid across v5e/v6e/v7x."""
    try:
        cap = int(pltpu.get_tpu_info().vmem_capacity_bytes)
    except Exception:
        cap = 64 * 1024 * 1024  # conservative (v7x per-TensorCore)
    return max(32 * 1024 * 1024, min(cap - 16 * 1024 * 1024, 112 * 1024 * 1024))


def _pick_row_tile(P: int, D: int, vmem_budget: int) -> int:
    """Largest (8,128)-friendly row tile whose per-step footprint fits VMEM."""
    if P % 128 != 0:
        # TODO(synk): non-128-multiple P falls back to a single full-P row tile
        # (fine for small/demo shapes); very large ragged P would need a padded
        # tile with edge masking instead.
        return P
    resident_kt = 2 * P * D * 2            # double-buffered bf16 resident keys^T
    for tq in (512, 256, 128):
        if P % tq:
            continue
        per_step = (resident_kt
                    + 2 * 2 * tq * D * 2    # double-buffered bf16 q + positive-key tiles
                    + 3 * tq * P * 4        # (TQ, P) f32 logits + exp temporaries
                    + 2 * tq * 4)           # output tile
        if per_step <= vmem_budget:
            return tq
    return 128


def _patchnce_ce_kernel(q_ref, kt_ref, kd_ref, loss_ref, *, nce_T: float):
    """One (batch b, row-tile r) grid step.

    q_ref:    (1, TQ, D) bf16   queries of this row tile
    kt_ref:   (1, D,  P) bf16   all keys of this batch element, transposed
                                (resident across the row axis)
    kd_ref:   (1, TQ, D) bf16   key rows matching this row tile (the positives)
    loss_ref: (1, TQ, 1) f32    per-row cross-entropy loss
    """
    q = q_ref[0]                                             # (TQ, D)
    kt = kt_ref[0]                                           # (D,  P)
    kd = kd_ref[0]                                           # (TQ, D)

    inv_t = jnp.float32(1.0 / nce_T)
    neg_diag = jnp.float32(-10.0 / nce_T)

    # MXU: (TQ, D) x (D, P) -> (TQ, P), f32 accumulation, scaled by 1/T.  The
    # RHS contraction dim is already leading, so no per-step key transpose.
    s = lax.dot_general(
        q, kt, (((1,), (0,)), ((), ())),
        preferred_element_type=jnp.float32,
    ) * inv_t                                                # (TQ, P)

    # Positive logit: row-wise dot(q_i, k_i) -- a (TQ, D) VPU multiply + XLU
    # reduce instead of any (TQ, P) select / masked-sum pass.
    l_pos = jnp.sum(q.astype(jnp.float32) * kd.astype(jnp.float32),
                    axis=-1, keepdims=True) * inv_t          # (TQ, 1)

    # Cross entropy vs class 0 of [l_pos, s with diag replaced by -10/T]:
    #   exp(l_pos) cancels exactly with re-adding the diagonal of s, so the
    #   denominator is sum_j exp(s_ij) + exp(-10/T) over the *unmasked* tile.
    # (The row diagonal IS l_pos, so max(s) already covers the class-0 term.)
    m = jnp.maximum(jnp.max(s, axis=-1, keepdims=True), neg_diag)   # (TQ, 1)
    # NOTE: on v6e/v7x an EUP-bound variant can run this exp in bf16
    # ((s - m).astype(bf16)) while keeping the f32 row-sum accumulation; kept
    # in f32 here to stay comfortably inside the 5e-3 parity tolerance.
    sum_exp = (jnp.sum(jnp.exp(s - m), axis=-1, keepdims=True)
               + jnp.exp(neg_diag - m))                              # (TQ, 1)
    loss_ref[0] = m + jnp.log(sum_exp) - l_pos


def patchnce_loss2(feat_q, feat_k, *, batch_size, nce_T=0.07,
                   nce_includes_all_negatives_from_minibatch=False):
    """Per-sample PatchNCE cross-entropy loss, shape (N,) = (batch*npatches,)."""
    N, D = feat_q.shape
    B = 1 if nce_includes_all_negatives_from_minibatch else batch_size
    P = N // B
    assert B * P == N, "N must be divisible by the bmm batch dimension"

    # bf16 feeds the MXU at native rate and halves q/k DMA bytes; accumulation
    # stays f32 inside the kernel.
    q = feat_q.astype(jnp.bfloat16).reshape(B, P, D)
    k = feat_k.astype(jnp.bfloat16).reshape(B, P, D)
    # One-off HBM transpose (plain XLA op) so the kernel's MXU RHS is (D, P).
    kt = jnp.transpose(k, (0, 2, 1))                          # (B, D, P)

    vmem_budget = _vmem_budget_bytes()
    tq = _pick_row_tile(P, D, vmem_budget)
    n_r = P // tq

    # Megacore sharding: B >= 2 -> shard batches across cores and keep the row
    # axis "arbitrary" so each core loads its resident key tile once per batch
    # element; B == 1 -> the row axis is the only shardable one.
    dim_sem = (("parallel", "arbitrary") if B > 1
               else ("arbitrary", "parallel"))

    kernel = functools.partial(_patchnce_ce_kernel, nce_T=nce_T)

    loss = pl.pallas_call(
        kernel,
        out_shape=jax.ShapeDtypeStruct((B, P, 1), jnp.float32),
        grid_spec=pltpu.PrefetchScalarGridSpec(
            num_scalar_prefetch=0,
            grid=(B, n_r),
            in_specs=[
                # q rows of this tile.
                pl.BlockSpec((1, tq, D), lambda b, r: (b, r, 0)),
                # All keys^T of this batch element; index_map ignores r so the
                # (D, P) tile stays resident in VMEM across all row tiles.
                # TODO(synk): could add pipeline_mode=pl.Buffered(1) here to
                # drop the second buffer of the r-invariant key block on v7x.
                pl.BlockSpec((1, D, P), lambda b, r: (b, 0, 0)),
                # Matching key rows (positives) for the cheap l_pos row-dot.
                pl.BlockSpec((1, tq, D), lambda b, r: (b, r, 0)),
            ],
            out_specs=pl.BlockSpec((1, tq, 1), lambda b, r: (b, r, 0)),
        ),
        compiler_params=pltpu.CompilerParams(
            dimension_semantics=dim_sem,
            vmem_limit_bytes=int(vmem_budget),
        ),
    )(q, kt, k)

    return loss.reshape(N)


def _reference(feat_q, feat_k, *, batch_size, nce_T=0.07):
    """Pure-JAX reference (f32 math over the same bf16-rounded q/k)."""
    N, D = feat_q.shape
    P = N // batch_size
    qb = feat_q.astype(jnp.bfloat16).astype(jnp.float32).reshape(batch_size, P, D)
    kb = feat_k.astype(jnp.bfloat16).astype(jnp.float32).reshape(batch_size, P, D)
    s = jnp.einsum("bpd,bqd->bpq", qb, kb,
                   precision=lax.Precision.HIGHEST) * jnp.float32(1.0 / nce_T)
    eye = jnp.eye(P, dtype=bool)[None]
    l_pos = jnp.sum(jnp.where(eye, s, 0.0), axis=-1).reshape(N, 1)
    l_neg = jnp.where(eye, jnp.float32(-10.0 / nce_T), s).reshape(N, P)
    out = jnp.concatenate([l_pos, l_neg], axis=1)
    # CrossEntropyLoss(reduction='none') with target index 0.
    return jax.nn.logsumexp(out, axis=1) - out[:, 0]


if __name__ == "__main__":
    key = jax.random.PRNGKey(0)
    kq, kk = jax.random.split(key)

    batch_size = 2
    npatches = 8
    dim = 32
    N = batch_size * npatches

    feat_q = jax.random.normal(kq, (N, dim), dtype=jnp.float32)
    feat_k = jax.random.normal(kk, (N, dim), dtype=jnp.float32)

    loss = patchnce_loss2(feat_q, feat_k, batch_size=batch_size, nce_T=0.07)
    loss = jax.block_until_ready(loss)

    ref = _reference(feat_q, feat_k, batch_size=batch_size, nce_T=0.07)
    np.testing.assert_allclose(np.asarray(loss), np.asarray(ref), rtol=5e-3, atol=5e-3)

    print("KERNEL_OK")
</pallas_src>

<mosaic_0001>
module attributes {stable_mosaic.version = 11 : i64} {
  func.func @_patchnce_ce_kernel(%arg0: i32, %arg1: i32, %arg2: memref<1x8x32xbf16, #tpu.memory_space<vmem>>, %arg3: memref<1x32x8xbf16, #tpu.memory_space<vmem>>, %arg4: memref<1x8x32xbf16, #tpu.memory_space<vmem>>, %arg5: memref<1x8x1xf32, #tpu.memory_space<vmem>>) attributes {dimension_semantics = [#tpu.dimension_semantics<parallel>, #tpu.dimension_semantics<arbitrary>], iteration_bounds = array<i64: 2, 1>, scalar_prefetch = 0 : i64, scratch_operands = 0 : i64, tpu.core_type = #tpu.core_type<tc>, window_params = [{transform_indices = @transform_0, window_bounds = array<i64: 1, 8, 32>}, {transform_indices = @transform_1, window_bounds = array<i64: 1, 32, 8>}, {transform_indices = @transform_2, window_bounds = array<i64: 1, 8, 32>}, {transform_indices = @transform_3, window_bounds = array<i64: 1, 8, 1>}]} {
    %c0 = arith.constant 0 : index
    %c0_0 = arith.constant 0 : index
    %c0_1 = arith.constant 0 : index
    %0 = vector.load %arg2[%c0, %c0_0, %c0_1] : memref<1x8x32xbf16, #tpu.memory_space<vmem>>, vector<1x8x32xbf16>
    %1 = vector.shape_cast %0 : vector<1x8x32xbf16> to vector<8x32xbf16>
    %c0_2 = arith.constant 0 : index
    %c0_3 = arith.constant 0 : index
    %c0_4 = arith.constant 0 : index
    %2 = vector.load %arg3[%c0_2, %c0_3, %c0_4] : memref<1x32x8xbf16, #tpu.memory_space<vmem>>, vector<1x32x8xbf16>
    %3 = vector.shape_cast %2 : vector<1x32x8xbf16> to vector<32x8xbf16>
    %c0_5 = arith.constant 0 : index
    %c0_6 = arith.constant 0 : index
    %c0_7 = arith.constant 0 : index
    %4 = vector.load %arg4[%c0_5, %c0_6, %c0_7] : memref<1x8x32xbf16, #tpu.memory_space<vmem>>, vector<1x8x32xbf16>
    %5 = vector.shape_cast %4 : vector<1x8x32xbf16> to vector<8x32xbf16>
    %cst = arith.constant dense<0.000000e+00> : vector<8x8xf32>
    %6 = tpu.matmul %1, %3, %cst {dimension_numbers = #tpu.dot_dimension_numbers<[1], [0], [0], [1], [0, 0, 1, 1], [], []>} : vector<8x32xbf16>, vector<32x8xbf16>, vector<8x8xf32> -> vector<8x8xf32>
    %cst_8 = arith.constant 14.2857141 : f32
    %7 = vector.broadcast %cst_8 : f32 to vector<8x8xf32>
    %8 = arith.mulf %6, %7 : vector<8x8xf32>
    %9 = arith.extf %1 : vector<8x32xbf16> to vector<8x32xf32>
    %10 = arith.extf %5 : vector<8x32xbf16> to vector<8x32xf32>
    %11 = arith.mulf %9, %10 : vector<8x32xf32>
    %cst_9 = arith.constant dense<0.000000e+00> : vector<8xf32>
    %12 = vector.multi_reduction <add>, %11, %cst_9 [1] : vector<8x32xf32> to vector<8xf32>
    %13 = vector.shape_cast %12 : vector<8xf32> to vector<8x1xf32>
    %cst_10 = arith.constant 14.2857141 : f32
    %14 = vector.broadcast %cst_10 : f32 to vector<8x1xf32>
    %15 = arith.mulf %13, %14 : vector<8x1xf32>
    %cst_11 = arith.constant dense<0xFF800000> : vector<8xf32>
    %16 = vector.multi_reduction <maximumf>, %8, %cst_11 [1] : vector<8x8xf32> to vector<8xf32>
    %17 = vector.shape_cast %16 : vector<8xf32> to vector<8x1xf32>
    %cst_12 = arith.constant -142.857147 : f32
    %18 = vector.broadcast %cst_12 : f32 to vector<8x1xf32>
    %19 = arith.maximumf %17, %18 : vector<8x1xf32>
    %20 = vector.broadcast %19 : vector<8x1xf32> to vector<8x8xf32>
    %21 = arith.subf %8, %20 : vector<8x8xf32>
    %22 = math.exp %21 : vector<8x8xf32>
    %cst_13 = arith.constant dense<0.000000e+00> : vector<8xf32>
    %23 = vector.multi_reduction <add>, %22, %cst_13 [1] : vector<8x8xf32> to vector<8xf32>
    %24 = vector.shape_cast %23 : vector<8xf32> to vector<8x1xf32>
    %cst_14 = arith.constant -142.857147 : f32
    %25 = vector.broadcast %cst_14 : f32 to vector<8x1xf32>
    %26 = arith.subf %25, %19 : vector<8x1xf32>
    %27 = math.exp %26 : vector<8x1xf32>
    %28 = arith.addf %24, %27 : vector<8x1xf32>
    %29 = math.log %28 : vector<8x1xf32>
    %30 = arith.addf %19, %29 : vector<8x1xf32>
    %31 = arith.subf %30, %15 : vector<8x1xf32>
    %c0_15 = arith.constant 0 : index
    %c0_16 = arith.constant 0 : index
    %c0_17 = arith.constant 0 : index
    %32 = vector.load %arg5[%c0_15, %c0_16, %c0_17] : memref<1x8x1xf32, #tpu.memory_space<vmem>>, vector<1x8x1xf32>
    %33 = vector.shape_cast %32 : vector<1x8x1xf32> to vector<8x1xf32>
    %34 = vector.shape_cast %31 : vector<8x1xf32> to vector<1x8x1xf32>
    tpu.vector_store %arg5[%c0_15, %c0_16, %c0_17], %34 {strides = array<i32>} : memref<1x8x1xf32, #tpu.memory_space<vmem>>, vector<1x8x1xf32>,
    return
  }
  func.func @transform_0(%arg0: i32, %arg1: i32) -> (i32, i32, i32) {
    %c0_i32 = arith.constant 0 : i32
    %c0_i32_0 = arith.constant 0 : i32
    return %arg0, %arg1, %c0_i32 : i32, i32, i32
  }
  func.func @transform_1(%arg0: i32, %arg1: i32) -> (i32, i32, i32) {
    %c0_i32 = arith.constant 0 : i32
    %c0_i32_0 = arith.constant 0 : i32
    %c0_i32_1 = arith.constant 0 : i32
    return %arg0, %c0_i32, %c0_i32_0 : i32, i32, i32
  }
  func.func @transform_2(%arg0: i32, %arg1: i32) -> (i32, i32, i32) {
    %c0_i32 = arith.constant 0 : i32
    %c0_i32_0 = arith.constant 0 : i32
    return %arg0, %arg1, %c0_i32 : i32, i32, i32
  }
  func.func @transform_3(%arg0: i32, %arg1: i32) -> (i32, i32, i32) {
    %c0_i32 = arith.constant 0 : i32
    %c0_i32_0 = arith.constant 0 : i32
    return %arg0, %arg1, %c0_i32 : i32, i32, i32
  }
}

</mosaic_0001>

<llo_original>
// kernel: tpu_custom_call.1
$region0: #{tpu_custom_call.1}
  #allocation0 [shape = 'u32[]', space=smem, size = 0x4, offset = 0x4, fixed_abs, tag = 'smem constant byte address 0x4 - core index']
  #allocation1 [shape = 'u32[144,128]{1,0:T(1,128)}', space=vmem, size = 0x12000, scoped, tag = 'internal scratch']
  %s0 = inlined_call_operand.vmem [shape: bf16[2,8,32], index: 0, kind: input, shape index: {}]
  %s1 = inlined_call_operand.vmem [shape: bf16[2,32,8], index: 1, kind: input, shape index: {}]
  %s2 = inlined_call_operand.vmem [shape: bf16[2,8,32], index: 2, kind: input, shape index: {}]
  %s3 = inlined_call_operand.vmem [shape: f32[2,8,1], index: 3, kind: output, shape index: {}]
  %s4 = sld [smem:[#allocation0]]
  $region45: #{tpu_custom_call.1} parent=0
    _
  %s6 = ssub.s32 1, %s4
  %s7 = scalar_select 0, %s6, %s4
  loop: start=0, step=1, limit=4
  $region2: #{tpu_custom_call.1} parent=0 // loop_pre_header
    _
  $region3: #{tpu_custom_call.1} parent=0 // loop_header
    %s9 = sphi 0, %s13
    %p10 = scmp.ge.s32.totalorder %s9, 4
    %s16 = sphi 0, %s28
    %s17 = sphi 0, %s24
    %s18 = sphi 0, %s16
    %s19 = sphi 0, %s17
    %s20 = sphi 0, %s18
    %s21 = sphi 0, %s19
    %s33 = sphi 0, %s35
    %s36 = sphi 0, %s33
    %s37 = sphi 0, %s36
    %s53 = sphi 0, %s37
    %s59 = sphi 0, %s61
    %s62 = sphi 0, %s59
    %s63 = sphi 0, %s62
    %s79 = sphi 0, %s63
    %s87 = sphi 0, %s89
    %s90 = sphi 0, %s87
    %s91 = sphi 0, %s90
    %s107 = sphi 0, %s91
    %s115 = sphi 0, %s117
    %s118 = sphi 0, %s115
    %s119 = sphi 0, %s118
    %s135 = sphi 0, %s119
  $region4: #{tpu_custom_call.1} parent=0 // loop_header_branch
    %12 = sbr.rel (%p10) target = $region8
  $region5: #{tpu_custom_call.1} parent=0 // loop_body
    %s14 = ssub.s32 %s9, 1
    %s15 = ssub.s32 %s9, 2
    %s22 = sadd.s32 1, %s17
    %p23 = scmp.ge.s32.totalorder %s22, 1
    %s24 = scalar_select %p23, 0, %s22
    %s25 = sadd.s32 1, %s16
    %s26 = scalar_select %p23, %s25, %s16
    %p27 = scmp.ge.s32.totalorder %s26, 2
    %s28 = scalar_select %p27, 0, %s26
    %s29 = ssub.s32 %s16, %s28
    %s30 = ssub.s32 %s17, %s24
    %s31 = sor.u32 %s29, %s30
    %p32 = scmp.eq.s32.totalorder %s31, 0
    %s34 = sadd.s32 %s33, 1
    %s35 = scalar_select %p32, %s33, %s34
    %p38 = pneg %p32
    %p39 = scmp.eq.s32.totalorder %s9, 1
    %p40 = por %p38, %p39
    %p41 = scmp.ne.s32.totalorder %s33, %s36
    %p42 = scmp.eq.s32.totalorder %s9, 0
    %p43 = por %p41, %p42
    %p44 = scmp.ne.s32.totalorder %s33, %s36
    %p45 = scmp.eq.s32.totalorder %s14, 1
    %p46 = por %p44, %p45
    %p47 = scmp.ne.s32.totalorder %s36, %s37
    %p48 = scmp.eq.s32.totalorder %s14, 0
    %p49 = por %p47, %p48
    %p50 = scmp.ne.s32.totalorder %s36, %s37
    %p51 = scmp.eq.s32.totalorder %s15, 1
    %p52 = por %p50, %p51
    %p54 = scmp.ne.s32.totalorder %s37, %s53
    %p55 = scmp.eq.s32.totalorder %s15, 0
    %p56 = por %p54, %p55
    %s57 = ssub.s32 %s16, %s28
    %p58 = scmp.eq.s32.totalorder %s57, 0
    %s60 = sadd.s32 %s59, 1
    %s61 = scalar_select %p58, %s59, %s60
    %p64 = pneg %p58
    %p65 = scmp.eq.s32.totalorder %s9, 1
    %p66 = por %p64, %p65
    %p67 = scmp.ne.s32.totalorder %s59, %s62
    %p68 = scmp.eq.s32.totalorder %s9, 0
    %p69 = por %p67, %p68
    %p70 = scmp.ne.s32.totalorder %s59, %s62
    %p71 = scmp.eq.s32.totalorder %s14, 1
    %p72 = por %p70, %p71
    %p73 = scmp.ne.s32.totalorder %s62, %s63
    %p74 = scmp.eq.s32.totalorder %s14, 0
    %p75 = por %p73, %p74
    %p76 = scmp.ne.s32.totalorder %s62, %s63
    %p77 = scmp.eq.s32.totalorder %s15, 1
    %p78 = por %p76, %p77
    %p80 = scmp.ne.s32.totalorder %s63, %s79
    %p81 = scmp.eq.s32.totalorder %s15, 0
    %p82 = por %p80, %p81
    %s83 = ssub.s32 %s16, %s28
    %s84 = ssub.s32 %s17, %s24
    %s85 = sor.u32 %s83, %s84
    %p86 = scmp.eq.s32.totalorder %s85, 0
    %s88 = sadd.s32 %s87, 1
    %s89 = scalar_select %p86, %s87, %s88
    %p92 = pneg %p86
    %p93 = scmp.eq.s32.totalorder %s9, 1
    %p94 = por %p92, %p93
    %p95 = scmp.ne.s32.totalorder %s87, %s90
    %p96 = scmp.eq.s32.totalorder %s9, 0
    %p97 = por %p95, %p96
    %p98 = scmp.ne.s32.totalorder %s87, %s90
    %p99 = scmp.eq.s32.totalorder %s14, 1
    %p100 = por %p98, %p99
    %p101 = scmp.ne.s32.totalorder %s90, %s91
    %p102 = scmp.eq.s32.totalorder %s14, 0
    %p103 = por %p101, %p102
    %p104 = scmp.ne.s32.totalorder %s90, %s91
    %p105 = scmp.eq.s32.totalorder %s15, 1
    %p106 = por %p104, %p105
    %p108 = scmp.ne.s32.totalorder %s91, %s107
    %p109 = scmp.eq.s32.totalorder %s15, 0
    %p110 = por %p108, %p109
    %s111 = ssub.s32 %s16, %s28
    %s112 = ssub.s32 %s17, %s24
    %s113 = sor.u32 %s111, %s112
    %p114 = scmp.eq.s32.totalorder %s113, 0
    %s116 = sadd.s32 %s115, 1
    %s117 = scalar_select %p114, %s115, %s116
    %p120 = pneg %p114
    %p121 = scmp.eq.s32.totalorder %s9, 1
    %p122 = por %p120, %p121
    %p123 = scmp.ne.s32.totalorder %s115, %s118
    %p124 = scmp.eq.s32.totalorder %s9, 0
    %p125 = por %p123, %p124
    %p126 = scmp.ne.s32.totalorder %s115, %s118
    %p127 = scmp.eq.s32.totalorder %s14, 1
    %p128 = por %p126, %p127
    %p129 = scmp.ne.s32.totalorder %s118, %s119
    %p130 = scmp.eq.s32.totalorder %s14, 0
    %p131 = por %p129, %p130
    %p132 = scmp.ne.s32.totalorder %s118, %s119
    %p133 = scmp.eq.s32.totalorder %s15, 1
    %p134 = por %p132, %p133
    %p136 = scmp.ne.s32.totalorder %s119, %s135
    %p137 = scmp.eq.s32.totalorder %s15, 0
    %p138 = por %p136, %p137
    %p139 = scmp.le.s32.totalorder 1, %s9
    %p140 = scmp.lt.s32.totalorder %s9, 3
    %p141 = pnand %p139, %p140
    %p142 = pneg %p141
    // Predicated region
    $region9: #{tpu_custom_call.1} parent=5 // pred_check
      _
    $region10: #{tpu_custom_call.1} parent=5 // pred_check_branch
      %144 = sbr.rel (%p141) target = $region12
    $region11: #{tpu_custom_call.1} parent=5 // pred_region
      %s145 = ssub.s32 %s9, 1
    $region12: #{tpu_custom_call.1} parent=5 // pred_fallthru
      _
    %p146 = scmp.lt.s32.totalorder %s9, 2
    // Predicated region
    $region13: #{tpu_custom_call.1} parent=5 // pred_check
      %p147 = pneg %p146
    $region14: #{tpu_custom_call.1} parent=5 // pred_check_branch
      %149 = sbr.rel (%p147) target = $region16
    $region15: #{tpu_custom_call.1} parent=5 // pred_region
      // Predicated region
      $region17: #{tpu_custom_call.1} parent=15 // pred_check
        %p150 = pneg %p43
      $region18: #{tpu_custom_call.1} parent=15 // pred_check_branch
        %152 = sbr.rel (%p150) target = $region20
      $region19: #{tpu_custom_call.1} parent=15 // pred_region
        %p153 = scmp.lt.s32.totalorder %s16, 1
        %s154 = scalar_select %p153, %s16, 1
        %p155 = scmp.lt.s32.totalorder %s17, 0
        %s156 = scalar_select %p155, %s17, 0
        %s157 = sadd.s32 %s156, %s154
        %s158 = smul.addr %s157, 4
        %s159 = scalar_lea.vmem %s0, %s158
      $region20: #{tpu_custom_call.1} parent=15 // pred_fallthru
        _
      // Predicated region
      $region21: #{tpu_custom_call.1} parent=15 // pred_check
        %p160 = pneg %p69
      $region22: #{tpu_custom_call.1} parent=15 // pred_check_branch
        %162 = sbr.rel (%p160) target = $region24
      $region23: #{tpu_custom_call.1} parent=15 // pred_region
        %p163 = scmp.lt.s32.totalorder %s16, 1
        %s164 = scalar_select %p163, %s16, 1
        %s165 = smul.addr %s164, 4
        %s166 = smul.addr %s165, 4
        %s167 = scalar_lea.vmem %s1, %s166
      $region24: #{tpu_custom_call.1} parent=15 // pred_fallthru
        _
      // Predicated region
      $region25: #{tpu_custom_call.1} parent=15 // pred_check
        %p168 = pneg %p97
      $region26: #{tpu_custom_call.1} parent=15 // pred_check_branch
        %170 = sbr.rel (%p168) target = $region28
      $region27: #{tpu_custom_call.1} parent=15 // pred_region
        %p171 = scmp.lt.s32.totalorder %s16, 1
        %s172 = scalar_select %p171, %s16, 1
        %p173 = scmp.lt.s32.totalorder %s17, 0
        %s174 = scalar_select %p173, %s17, 0
        %s175 = sadd.s32 %s174, %s172
        %s176 = smul.addr %s175, 4
        %s177 = scalar_lea.vmem %s2, %s176
      $region28: #{tpu_custom_call.1} parent=15 // pred_fallthru
        _
    $region16: #{tpu_custom_call.1} parent=5 // pred_fallthru
      _
    %p178 = scmp.le.s32.totalorder 1, %s9
    %p179 = scmp.lt.s32.totalorder %s9, 3
    %p180 = pnand %p178, %p179
    %p181 = pneg %p180
    // Predicated region
    $region29: #{tpu_custom_call.1} parent=5 // pred_check
      _
    $region30: #{tpu_custom_call.1} parent=5 // pred_check_branch
      %183 = sbr.rel (%p180) target = $region32
    $region31: #{tpu_custom_call.1} parent=5 // pred_region
      %s184 = ssub.s32 %s9, 1
      %p185 = scmp.lt.s32.totalorder %s18, 1
      %s186 = scalar_select %p185, %s18, 1
      %p187 = scmp.lt.s32.totalorder %s19, 0
      %s188 = scalar_select %p187, %s19, 0
      %s189 = sadd.s32 %s188, %s186
      %s190 = smul.addr %s189, 4
      %s191 = scalar_lea.vmem %s0, %s190
      %p192 = pneg %p49
      %p193 = pneg %p46
      %p194 = scmp.lt.s32.totalorder %s18, 1
      %s195 = scalar_select %p194, %s18, 1
      %s196 = smul.addr %s195, 4
      %s197 = smul.addr %s196, 4
      %s198 = scalar_lea.vmem %s1, %s197
      %p199 = pneg %p75
      %p200 = pneg %p72
      %p201 = scmp.lt.s32.totalorder %s18, 1
      %s202 = scalar_select %p201, %s18, 1
      %p203 = scmp.lt.s32.totalorder %s19, 0
      %s204 = scalar_select %p203, %s19, 0
      %s205 = sadd.s32 %s204, %s202
      %s206 = smul.addr %s205, 4
      %s207 = scalar_lea.vmem %s2, %s206
      %p208 = pneg %p103
      %p209 = pneg %p100
      %p210 = pneg %p131
      %p211 = pneg %p128
      %p212 = scmp.lt.s32.totalorder %s18, 1
      %s213 = scalar_select %p212, %s18, 1
      %p214 = scmp.lt.s32.totalorder %s19, 0
      %s215 = scalar_select %p214, %s19, 0
      %s216 = sadd.s32 %s215, %s213
      %s217 = smul.addr %s216, 8
      %s218 = scalar_lea.vmem %s3, %s217
      %p219 = scmp.lt.s32.totalorder %s18, 1
      %s220 = scalar_select %p219, %s18, 1
      %p221 = scmp.lt.s32.totalorder %s19, 0
      %s222 = scalar_select %p221, %s19, 0
      %s223 = sadd.s32 %s222, %s220
      %s224 = smul.addr %s223, 4
      %s225 = scalar_lea.vmem %s0, %s224
      %p226 = scmp.lt.s32.totalorder %s18, 1
      %s227 = scalar_select %p226, %s18, 1
      %s228 = smul.addr %s227, 4
      %s229 = smul.addr %s228, 4
      %s230 = scalar_lea.vmem %s1, %s229
      %p231 = scmp.lt.s32.totalorder %s18, 1
      %s232 = scalar_select %p231, %s18, 1
      %p233 = scmp.lt.s32.totalorder %s19, 0
      %s234 = scalar_select %p233, %s19, 0
      %s235 = sadd.s32 %s234, %s232
      %s236 = smul.addr %s235, 4
      %s237 = scalar_lea.vmem %s2, %s236
      %p238 = scmp.lt.s32.totalorder %s18, 1
      %s239 = scalar_select %p238, %s18, 1
      %p240 = scmp.lt.s32.totalorder %s19, 0
      %s241 = scalar_select %p240, %s19, 0
      %s242 = sadd.s32 %s241, %s239
      %s243 = smul.addr %s242, 8
      %s244 = scalar_lea.vmem %s3, %s243
      %v246 = vld [vmem:[%s225] sm:$0xf]
      %v247 = vld [vmem:[%s230] sm:$0xf]
      %v248 = vld [vmem:[%s230 + $0x4] sm:$0xf]
      %v249 = vld [vmem:[%s230 + $0x8] sm:$0xf]
      %v250 = vld [vmem:[%s230 + $0xc] sm:$0xf]
      %v251 = vld [vmem:[%s237] sm:$0xf]
      %v256 = vunpack.c.l.b16 %v247
      %v257 = vunpack.c.l.b16 %v248
      %v258 = vunpack.c.l.b16 %v249
      %v259 = vunpack.c.l.b16 %v250
      %v260 = vpack.c.b16 %v257, %v256
      %v261 = vpack.c.b16 %v259, %v258
      %vm264 = vcmask 261120
      %v266 = vsel %vm264, %v246, 0
      %268 = vmatprep.subr.bf16.mxu0 0
      %269 = vmatpush1.bf16.msra.mxu0 %v260
      %270 = vmatprep.subr.bf16.mxu0 0
      %271 = vmatpush1.bf16.msra.mxu0 %v261
      %272 = vmatprep.subr.bf16.mxu0 0
      %273 = vmatpush1.bf16.msra.mxu0 0
      %274 = vmatprep.subr.bf16.mxu0 0
      %275 = vmatpush1.bf16.msra.mxu0 0
      %276 = vmatprep.subr.bf16.mxu0 0
      %277 = vmatpush1.bf16.msra.mxu0 0
      %278 = vmatprep.subr.bf16.mxu0 0
      %279 = vmatpush1.bf16.msra.mxu0 0
      %280 = vmatprep.subr.bf16.mxu0 0
      %281 = vmatpush1.bf16.msra.mxu0 0
      %282 = vmatprep.subr.bf16.mxu0 0
      %283 = vmatpush1.bf16.msra.mxu0 0
      %284 = vmatprep.subr.bf16.mxu0 0
      %285 = vmatpush1.bf16.msra.mxu0 0
      %286 = vmatprep.subr.bf16.mxu0 0
      %287 = vmatpush1.bf16.msra.mxu0 0
      %288 = vmatprep.subr.bf16.mxu0 0
      %289 = vmatpush1.bf16.msra.mxu0 0
      %290 = vmatprep.subr.bf16.mxu0 0
      %291 = vmatpush1.bf16.msra.mxu0 0
      %292 = vmatprep.subr.bf16.mxu0 0
      %293 = vmatpush1.bf16.msra.mxu0 0
      %294 = vmatprep.subr.bf16.mxu0 0
      %295 = vmatpush1.bf16.msra.mxu0 0
      %296 = vmatprep.subr.bf16.mxu0 0
      %297 = vmatpush1.bf16.msra.mxu0 0
      %298 = vmatprep.subr.bf16.mxu0 0
      %299 = vmatpush1.bf16.msra.mxu0 0
      %300 = vmatprep.mubr.bf16.mxu0 0
      %301 = vmatmul.mubr.bf16.gmra.mrb[0].mxu0 %v266
      %v302 = vpop.f32.mrb[0].mxu0
      %v303 = vadd.f32 0.0, %v302
      %v304 = vpop.f32.mrb[0].mxu0
      %v305 = vpop.f32.mrb[0].mxu0
      %v306 = vpop.f32.mrb[0].mxu0
      %307 = vdwg.mxu0
      %v308 = vmul.f32 %v303, 14.285714
      %v309 = vunpack.c.l.bf16 %v246
      %v310 = vunpack.c.l.bf16 %v251
      %v311 = vmul.f32 %v309, %v310
      %v312 = vsel %vm264, %v311, 0.0
      %313 = vadd.xlane.f32.xlu0 %v312
      %v314 = vpop.xlane.xlu0 %313
      %v315 = vmul.f32 %v314, 14.285714
      %vm316 = vcmask 64512
      %v317 = vsel %vm316, %v308, -inf
      %318 = vmax.xlane.f32.xlu0 %v317
      %v319 = vpop.xlane.xlu0 %318
      %v320 = vmax.f32 %v319, -142.85715
      %v321 = vsub.f32 %v308, %v320
      %v322 = vmul.f32 %v321, 1.442695
      %v323 = vpow.pop %v322
      %v324 = vsel %vm316, %v323, 0.0
      %325 = vadd.xlane.f32.xlu0 %v324
      %v326 = vpop.xlane.xlu0 %325
      %v327 = vsub.f32 -142.85715, %v320
      %v328 = vmul.f32 %v327, 1.442695
      %v329 = vpow.pop %v328
      %v330 = vadd.f32 %v326, %v329
      %v331 = vlog2.pop %v330
      %v332 = vmul.f32 %v331, 0.6931472
      %v333 = vadd.f32 %v320, %v332
      %v334 = vsub.f32 %v333, %v315
      %vm335 = vcmask 7168
      %336 = vst.msk [vmem:[%s244] sm:$0xff] %vm335, %v334
      %p337 = scmp.lt.s32.totalorder %s18, 1
      %s338 = scalar_select %p337, %s18, 1
      %p339 = scmp.lt.s32.totalorder %s19, 0
      %s340 = scalar_select %p339, %s19, 0
      %s341 = sadd.s32 %s340, %s338
      %s342 = smul.addr %s341, 8
      %s343 = scalar_lea.vmem %s3, %s342
      // Predicated region
      $region33: #{tpu_custom_call.1} parent=31 // pred_check
        %p344 = pneg %p128
      $region34: #{tpu_custom_call.1} parent=31 // pred_check_branch
        %346 = sbr.rel (%p344) target = $region36
      $region35: #{tpu_custom_call.1} parent=31 // pred_region
        _
      $region36: #{tpu_custom_call.1} parent=31 // pred_fallthru
        _
    $region32: #{tpu_custom_call.1} parent=5 // pred_fallthru
      _
    %p347 = scmp.le.s32.totalorder 2, %s9
    // Predicated region
    $region37: #{tpu_custom_call.1} parent=5 // pred_check
      %p348 = pneg %p347
    $region38: #{tpu_custom_call.1} parent=5 // pred_check_branch
      %350 = sbr.rel (%p348) target = $region40
    $region39: #{tpu_custom_call.1} parent=5 // pred_region
      %s351 = ssub.s32 %s9, 2
      // Predicated region
      $region41: #{tpu_custom_call.1} parent=39 // pred_check
        %p352 = pneg %p134
      $region42: #{tpu_custom_call.1} parent=39 // pred_check_branch
        %354 = sbr.rel (%p352) target = $region44
      $region43: #{tpu_custom_call.1} parent=39 // pred_region
        %p355 = scmp.lt.s32.totalorder %s20, 1
        %s356 = scalar_select %p355, %s20, 1
        %p357 = scmp.lt.s32.totalorder %s21, 0
        %s358 = scalar_select %p357, %s21, 0
        %s359 = sadd.s32 %s358, %s356
        %s360 = smul.addr %s359, 8
        %s361 = scalar_lea.vmem %s3, %s360
      $region44: #{tpu_custom_call.1} parent=39 // pred_fallthru
        _
    $region40: #{tpu_custom_call.1} parent=5 // pred_fallthru
      _
  $region6: #{tpu_custom_call.1} parent=0 // loop_footer
    %s13 = sadd.s32 1, %s9
  $region7: #{tpu_custom_call.1} parent=0 // loop_footer_branch
    %8 = sbr.rel target = $region3
  $region8: #{tpu_custom_call.1} parent=0 // loop_exit
    _

</llo_original>
